<compile_context>
chip_gen: v7x
topology: tpu7x:2x2x1
jax: 0.10.0
libtpu: 0.0.40
codegen_flags: <defaults>
</compile_context>

<pallas_src>
import functools

import jax
import jax.numpy as jnp
from jax import lax
from jax.experimental import pallas as pl
from jax.experimental.pallas import tpu as pltpu

LEAKY_SLOPE = 0.01  # nn.LeakyReLU default


def _leaky(x):
    return jnp.where(x >= 0, x, LEAKY_SLOPE * x)


def _resblock_kernel(identity_flag, H, W, Cin, Cout, cp_in, cout_pad, md,
                     x_ref, w1c_ref, s1_ref, b1_ref, w2s_ref, s2_ref, b2_ref,
                     o_ref):
    """One lane-batched slab (Nb images) per grid step; all lane-dense."""
    HW = H * W
    L = x_ref.shape[-1]                          # Nb * HW lanes

    x = x_ref[...]                               # (Cin, L)
    x_md = x.astype(md)

    # ---- conv1 (1x1) fused with the 1x1 identity conv (same RHS) ---------
    hr = jnp.dot(w1c_ref[...], x_md, preferred_element_type=jnp.float32)
    h = hr[:Cin, :]
    if identity_flag:
        res = hr[cp_in:cp_in + Cout, :]          # 8-aligned sublane band
    else:
        res = x.astype(jnp.float32)              # exact f32 skip (Cin == Cout)
    h = _leaky(h * s1_ref[...] + b1_ref[...])
    hm = h.astype(md)

    # ---- conv2 (3x3, padding=1): one MXU call for all 9 taps -------------
    # z[t*cout_pad : t*cout_pad+Cout] == W_t @ hm.  A per-lane roll/mask
    # commutes with the channel matmul, so tap t's contribution is
    # mask_t * roll(W_t @ hm, -d_t).  Wrapped/inter-image lanes are exactly
    # the masked ones, so results match zero padding.
    z = jnp.dot(w2s_ref[...], hm, preferred_element_type=jnp.float32)

    lane = lax.broadcasted_iota(jnp.int32, (1, L), 1)
    i_img = lane % HW                            # within-image flat index
    col = i_img % W
    top_ok = i_img >= W                          # h-1 >= 0
    bot_ok = i_img < (H - 1) * W                 # h+1 <= H-1
    left_ok = col >= 1                           # w-1 >= 0
    right_ok = col <= W - 2                      # w+1 <= W-1

    acc = None
    for dy in range(3):
        for dx in range(3):
            t = dy * 3 + dx
            d = (dy - 1) * W + (dx - 1)          # flat source offset of tap
            zt = z[t * cout_pad:t * cout_pad + Cout, :]
            if d != 0:
                zt = pltpu.roll(zt, shift=(-d) % L, axis=1)
            mask = None
            if dy == 0:
                mask = top_ok
            elif dy == 2:
                mask = bot_ok
            if dx == 0:
                mask = left_ok if mask is None else mask & left_ok
            elif dx == 2:
                mask = right_ok if mask is None else mask & right_ok
            if mask is not None:
                zt = jnp.where(mask, zt, 0.0)
            acc = zt if acc is None else acc + zt

    # ---- folded bn2, residual add, final LeakyReLU ------------------------
    h2 = acc * s2_ref[...] + b2_ref[...]
    o_ref[...] = _leaky(h2 + res).astype(o_ref.dtype)   # lane-dense store


def _pick_images_per_step(N, HW, *, lane_target=4096, min_steps=4):
    """Largest nb dividing N s.t. the block is legal, lanes <= lane_target and
    (when N allows) the grid keeps >= min_steps parallel steps for megacore."""
    best = None
    for nb in range(1, N + 1):
        if N % nb:
            continue
        if nb != N and (nb * HW) % 128 != 0:     # (8,128) block constraint
            continue
        if nb * HW > max(lane_target, HW):
            continue
        if (N // nb) < min(N, min_steps):
            continue
        best = nb
    return best if best is not None else N


def _vmem_limit_bytes(Cin, Cout, w1_rows, cout_pad, L, md):
    it = jnp.dtype(md).itemsize
    x_blk = Cin * L * 4                          # f32 worst case
    out_blk = Cout * L * 4
    w_b = (w1_rows * Cin + 9 * cout_pad * Cin) * it + 2 * (Cin + Cout) * 4
    temps = (w1_rows + 9 * cout_pad + 4 * Cout + 4 * Cin) * L * 4
    est = 2 * (x_blk + out_blk + w_b) + temps + (2 << 20)
    return int(min(max(est, 16 << 20), 48 << 20))   # stay under v7x 64 MiB


def residual_block_mi_max(x_nchw, w1, s1, b1, w2, s2, b2, wid, *, identity,
                          matmul_dtype=jnp.bfloat16, images_per_step=None):
    """x_nchw: (N, Cin, H, W) float32 (PyTorch layout). Returns (N, Cout, H, W).

    w1:  (Cin, Cin)        1x1 conv weight as (in, out)
    w2:  (3, 3, Cin, Cout) 3x3 conv weight, HWIO
    wid: (Cin, Cout)       1x1 identity-conv weight as (in, out)
    s*/b*: folded eval-mode BatchNorm scale/bias, shape (C,)
    matmul_dtype: bf16 by default (MXU-native on v5e/v6e/v7x; f32 accum kept).
    """
    N, Cin, H, W = x_nchw.shape
    Cout = w2.shape[-1]
    if not identity and Cin != Cout:
        raise ValueError("identity=False requires ch_in == ch_out")
    HW = H * W
    md = jnp.dtype(matmul_dtype)

    if images_per_step is None:
        nb = _pick_images_per_step(N, HW)
    else:
        nb = int(images_per_step)
        if N % nb or (nb != N and (nb * HW) % 128 != 0):
            raise ValueError("invalid images_per_step for this (N, H, W)")
    L = nb * HW
    grid = (N // nb,)

    # NCHW -> (Cin, N*HW): channels on sublanes, images back-to-back on lanes.
    x_cl = jnp.transpose(x_nchw.reshape(N, Cin, HW), (1, 0, 2)).reshape(Cin, N * HW)
    if identity:
        x_cl = x_cl.astype(md)       # skip path comes from the identity conv
    # identity=False: keep x f32 so the residual add is exact; the kernel
    # casts only the matmul operand.

    cp_in = -(-Cin // 8) * 8
    cout_pad = -(-Cout // 8) * 8

    # conv1 [+ identity conv] weights stacked along output rows (one MXU call).
    if identity:
        w1c = jnp.zeros((cp_in + Cout, Cin), jnp.float32)
        w1c = w1c.at[:Cin].set(jnp.transpose(w1))
        w1c = w1c.at[cp_in:cp_in + Cout].set(jnp.transpose(wid))
    else:
        w1c = jnp.transpose(w1)
    w1c = w1c.astype(md)

    # conv2 tap weights stacked along output rows; each tap padded to an
    # 8-aligned band so the in-kernel result slices are sublane-aligned.
    w2t = jnp.transpose(w2, (0, 1, 3, 2)).reshape(9, Cout, Cin)
    w2s = jnp.zeros((9, cout_pad, Cin), jnp.float32).at[:, :Cout, :].set(w2t)
    w2s = w2s.reshape(9 * cout_pad, Cin).astype(md)

    s1c = s1.reshape(Cin, 1).astype(jnp.float32)
    b1c = b1.reshape(Cin, 1).astype(jnp.float32)
    s2c = s2.reshape(Cout, 1).astype(jnp.float32)
    b2c = b2.reshape(Cout, 1).astype(jnp.float32)

    kernel = functools.partial(_resblock_kernel, bool(identity),
                               H, W, Cin, Cout, cp_in, cout_pad, md)

    grid_spec = pltpu.PrefetchScalarGridSpec(
        num_scalar_prefetch=0,
        grid=grid,
        in_specs=[
            pl.BlockSpec((Cin, L), lambda b: (0, b)),        # x (lane-dense)
            pl.BlockSpec(w1c.shape, lambda b: (0, 0)),       # conv1 [+id] wt
            pl.BlockSpec((Cin, 1), lambda b: (0, 0)),        # bn1 scale
            pl.BlockSpec((Cin, 1), lambda b: (0, 0)),        # bn1 bias
            pl.BlockSpec(w2s.shape, lambda b: (0, 0)),       # conv2 tap stack
            pl.BlockSpec((Cout, 1), lambda b: (0, 0)),       # bn2 scale
            pl.BlockSpec((Cout, 1), lambda b: (0, 0)),       # bn2 bias
        ],
        out_specs=pl.BlockSpec((Cout, L), lambda b: (0, b)),
    )

    out_cl = pl.pallas_call(
        kernel,
        out_shape=jax.ShapeDtypeStruct((Cout, N * HW), jnp.float32),
        grid_spec=grid_spec,
        compiler_params=pltpu.CompilerParams(
            dimension_semantics=("parallel",),
            vmem_limit_bytes=_vmem_limit_bytes(Cin, Cout, w1c.shape[0],
                                               cout_pad, L, md)),
    )(x_cl, w1c, s1c, b1c, w2s, s2c, b2c)

    return jnp.transpose(out_cl.reshape(Cout, N, HW),
                         (1, 0, 2)).reshape(N, Cout, H, W)


# ----------------------------- pure-JAX reference -----------------------------
def reference_forward(x_nchw, w1, s1, b1, w2, s2, b2, wid, *, identity):
    dn = ("NCHW", "HWIO", "NCHW")
    Cin = x_nchw.shape[1]
    Cout = w2.shape[-1]
    h = lax.conv_general_dilated(x_nchw, w1.reshape(1, 1, Cin, Cin),
                                 (1, 1), "VALID", dimension_numbers=dn)
    h = h * s1.reshape(1, Cin, 1, 1) + b1.reshape(1, Cin, 1, 1)
    h = _leaky(h)
    h = lax.conv_general_dilated(h, w2, (1, 1), "SAME", dimension_numbers=dn)
    h = h * s2.reshape(1, Cout, 1, 1) + b2.reshape(1, Cout, 1, 1)
    if identity:
        res = lax.conv_general_dilated(x_nchw, wid.reshape(1, 1, Cin, Cout),
                                       (1, 1), "VALID", dimension_numbers=dn)
    else:
        res = x_nchw
    return _leaky(h + res)


def make_params(key, ch_in, ch_out):
    ks = jax.random.split(key, 10)
    eps = 1e-5
    w1 = jax.random.normal(ks[0], (ch_in, ch_in), jnp.float32) * 0.2
    w2 = jax.random.normal(ks[1], (3, 3, ch_in, ch_out), jnp.float32) * 0.2
    wid = jax.random.normal(ks[2], (ch_in, ch_out), jnp.float32) * 0.2
    # BatchNorm (eval mode) params, folded into scale/bias.
    g1 = 1.0 + 0.1 * jax.random.normal(ks[3], (ch_in,), jnp.float32)
    be1 = 0.1 * jax.random.normal(ks[4], (ch_in,), jnp.float32)
    m1 = 0.1 * jax.random.normal(ks[5], (ch_in,), jnp.float32)
    v1 = jnp.abs(1.0 + 0.1 * jax.random.normal(ks[6], (ch_in,), jnp.float32))
    g2 = 1.0 + 0.1 * jax.random.normal(ks[7], (ch_out,), jnp.float32)
    be2 = 0.1 * jax.random.normal(ks[8], (ch_out,), jnp.float32)
    m2 = 0.1 * jax.random.normal(ks[9], (ch_out,), jnp.float32)
    v2 = jnp.ones((ch_out,), jnp.float32)
    s1 = g1 / jnp.sqrt(v1 + eps)
    b1 = be1 - m1 * s1
    s2 = g2 / jnp.sqrt(v2 + eps)
    b2 = be2 - m2 * s2
    return (w1, s1, b1, w2, s2, b2, wid)


if __name__ == "__main__":
    key = jax.random.PRNGKey(0)
    kx, kx4, kp1, kp2 = jax.random.split(key, 4)

    # PyTorch-native NCHW input.
    N, Cin, H, W, Cout = 2, 4, 16, 16, 8
    x = jax.random.normal(kx, (N, Cin, H, W), jnp.float32)

    # Case 1: identity=True (1x1-conv residual), ch_in != ch_out, f32 matmuls.
    params = make_params(kp1, Cin, Cout)
    out = jax.block_until_ready(
        residual_block_mi_max(x, *params, identity=True,
                              matmul_dtype=jnp.float32))
    ref = reference_forward(x, *params, identity=True)
    assert out.shape == ref.shape
    assert jnp.allclose(out, ref, rtol=1e-4, atol=1e-4), "mismatch (identity=True)"

    # Case 2: identity=False (plain residual add), ch_in == ch_out, f32 matmuls.
    params2 = make_params(kp2, Cin, Cin)
    out2 = jax.block_until_ready(
        residual_block_mi_max(x, *params2, identity=False,
                              matmul_dtype=jnp.float32))
    ref2 = reference_forward(x, *params2, identity=False)
    assert jnp.allclose(out2, ref2, rtol=1e-4, atol=1e-4), "mismatch (identity=False)"

    # Case 3: default bf16 matmul operands (MXU-native path), f32 accumulation.
    out3 = jax.block_until_ready(residual_block_mi_max(x, *params, identity=True))
    assert jnp.allclose(out3, ref, rtol=5e-2, atol=5e-2), "mismatch (bf16, identity=True)"

    # Case 4: bf16 matmuls + identity=False (residual add stays exact f32).
    out4 = jax.block_until_ready(residual_block_mi_max(x, *params2, identity=False))
    assert jnp.allclose(out4, ref2, rtol=5e-2, atol=5e-2), "mismatch (bf16, identity=False)"

    # Case 5: several images packed into the lane dim per grid step (N=4, Nb=2).
    x4 = jax.random.normal(kx4, (4, Cin, H, W), jnp.float32)
    out5 = jax.block_until_ready(
        residual_block_mi_max(x4, *params, identity=True,
                              matmul_dtype=jnp.float32, images_per_step=2))
    ref5 = reference_forward(x4, *params, identity=True)
    assert jnp.allclose(out5, ref5, rtol=1e-4, atol=1e-4), "mismatch (lane-batched)"

    print("KERNEL_OK")
</pallas_src>

<mosaic_0001>
module attributes {stable_mosaic.version = 11 : i64} {
  func.func @_resblock_kernel(%arg0: i32, %arg1: memref<4x256xf32, #tpu.memory_space<vmem>>, %arg2: memref<16x4xf32, #tpu.memory_space<vmem>>, %arg3: memref<4x1xf32, #tpu.memory_space<vmem>>, %arg4: memref<4x1xf32, #tpu.memory_space<vmem>>, %arg5: memref<72x4xf32, #tpu.memory_space<vmem>>, %arg6: memref<8x1xf32, #tpu.memory_space<vmem>>, %arg7: memref<8x1xf32, #tpu.memory_space<vmem>>, %arg8: memref<8x256xf32, #tpu.memory_space<vmem>>) attributes {dimension_semantics = [#tpu.dimension_semantics<parallel>], iteration_bounds = array<i64: 2>, scalar_prefetch = 0 : i64, scratch_operands = 0 : i64, tpu.core_type = #tpu.core_type<tc>, window_params = [{transform_indices = @transform_0, window_bounds = array<i64: 4, 256>}, {pipeline_mode = #tpu.pipeline_mode<synchronous>, transform_indices = @transform_1, window_bounds = array<i64: 16, 4>}, {pipeline_mode = #tpu.pipeline_mode<synchronous>, transform_indices = @transform_2, window_bounds = array<i64: 4, 1>}, {pipeline_mode = #tpu.pipeline_mode<synchronous>, transform_indices = @transform_3, window_bounds = array<i64: 4, 1>}, {pipeline_mode = #tpu.pipeline_mode<synchronous>, transform_indices = @transform_4, window_bounds = array<i64: 72, 4>}, {pipeline_mode = #tpu.pipeline_mode<synchronous>, transform_indices = @transform_5, window_bounds = array<i64: 8, 1>}, {pipeline_mode = #tpu.pipeline_mode<synchronous>, transform_indices = @transform_6, window_bounds = array<i64: 8, 1>}, {transform_indices = @transform_7, window_bounds = array<i64: 8, 256>}]} {
    %c0 = arith.constant 0 : index
    %c0_0 = arith.constant 0 : index
    %0 = vector.load %arg1[%c0, %c0_0] : memref<4x256xf32, #tpu.memory_space<vmem>>, vector<4x256xf32>
    %c0_1 = arith.constant 0 : index
    %c0_2 = arith.constant 0 : index
    %1 = vector.load %arg2[%c0_1, %c0_2] : memref<16x4xf32, #tpu.memory_space<vmem>>, vector<16x4xf32>
    %cst = arith.constant dense<0.000000e+00> : vector<16x256xf32>
    %2 = tpu.matmul %1, %0, %cst {dimension_numbers = #tpu.dot_dimension_numbers<[1], [0], [0], [1], [0, 0, 1, 1], [], []>} : vector<16x4xf32>, vector<4x256xf32>, vector<16x256xf32> -> vector<16x256xf32>
    %3 = vector.extract_strided_slice %2 {offsets = [0, 0], sizes = [4, 256], strides = [1, 1]} : vector<16x256xf32> to vector<4x256xf32>
    %4 = vector.extract_strided_slice %2 {offsets = [8, 0], sizes = [8, 256], strides = [1, 1]} : vector<16x256xf32> to vector<8x256xf32>
    %c0_3 = arith.constant 0 : index
    %c0_4 = arith.constant 0 : index
    %5 = vector.load %arg3[%c0_3, %c0_4] : memref<4x1xf32, #tpu.memory_space<vmem>>, vector<4x1xf32>
    %6 = vector.broadcast %5 : vector<4x1xf32> to vector<4x256xf32>
    %7 = arith.mulf %3, %6 : vector<4x256xf32>
    %c0_5 = arith.constant 0 : index
    %c0_6 = arith.constant 0 : index
    %8 = vector.load %arg4[%c0_5, %c0_6] : memref<4x1xf32, #tpu.memory_space<vmem>>, vector<4x1xf32>
    %9 = vector.broadcast %8 : vector<4x1xf32> to vector<4x256xf32>
    %10 = arith.addf %7, %9 : vector<4x256xf32>
    %cst_7 = arith.constant 0.000000e+00 : f32
    %11 = vector.broadcast %cst_7 : f32 to vector<4x256xf32>
    %12 = arith.cmpf oge, %10, %11 : vector<4x256xf32>
    %cst_8 = arith.constant 0.00999999977 : f32
    %13 = vector.broadcast %cst_8 : f32 to vector<4x256xf32>
    %14 = arith.mulf %13, %10 : vector<4x256xf32>
    %15 = arith.select %12, %10, %14 : vector<4x256xi1>, vector<4x256xf32>
    %c0_9 = arith.constant 0 : index
    %c0_10 = arith.constant 0 : index
    %16 = vector.load %arg5[%c0_9, %c0_10] : memref<72x4xf32, #tpu.memory_space<vmem>>, vector<72x4xf32>
    %cst_11 = arith.constant dense<0.000000e+00> : vector<72x256xf32>
    %17 = tpu.matmul %16, %15, %cst_11 {dimension_numbers = #tpu.dot_dimension_numbers<[1], [0], [0], [1], [0, 0, 1, 1], [], []>} : vector<72x4xf32>, vector<4x256xf32>, vector<72x256xf32> -> vector<72x256xf32>
    %18 = tpu.iota {dimensions = array<i32: 1>} : vector<1x256xi32>
    %c256_i32 = arith.constant 256 : i32
    %c0_i32 = arith.constant 0 : i32
    %19 = arith.cmpi eq, %c256_i32, %c0_i32 : i32
    %c1_i32 = arith.constant 1 : i32
    %20 = arith.select %19, %c1_i32, %c256_i32 : i32
    %21 = vector.broadcast %20 : i32 to vector<1x256xi32>
    %22 = arith.remsi %18, %21 : vector<1x256xi32>
    %c0_i32_12 = arith.constant 0 : i32
    %23 = vector.broadcast %c0_i32_12 : i32 to vector<1x256xi32>
    %24 = arith.cmpi ne, %22, %23 : vector<1x256xi32>
    %c0_i32_13 = arith.constant 0 : i32
    %25 = vector.broadcast %c0_i32_13 : i32 to vector<1x256xi32>
    %26 = arith.cmpi slt, %22, %25 : vector<1x256xi32>
    %c0_i32_14 = arith.constant 0 : i32
    %27 = arith.cmpi slt, %20, %c0_i32_14 : i32
    %28 = vector.broadcast %27 : i1 to vector<1x256xi1>
    %29 = vector.broadcast %28 : vector<1x256xi1> to vector<1x256xi1>
    %30 = arith.xori %26, %29 : vector<1x256xi1>
    %31 = arith.andi %30, %24 : vector<1x256xi1>
    %32 = vector.broadcast %20 : i32 to vector<1x256xi32>
    %33 = arith.addi %22, %32 : vector<1x256xi32>
    %34 = arith.select %31, %33, %22 : vector<1x256xi1>, vector<1x256xi32>
    %c16_i32 = arith.constant 16 : i32
    %c0_i32_15 = arith.constant 0 : i32
    %35 = arith.cmpi eq, %c16_i32, %c0_i32_15 : i32
    %c1_i32_16 = arith.constant 1 : i32
    %36 = arith.select %35, %c1_i32_16, %c16_i32 : i32
    %37 = vector.broadcast %36 : i32 to vector<1x256xi32>
    %38 = arith.remsi %34, %37 : vector<1x256xi32>
    %c0_i32_17 = arith.constant 0 : i32
    %39 = vector.broadcast %c0_i32_17 : i32 to vector<1x256xi32>
    %40 = arith.cmpi ne, %38, %39 : vector<1x256xi32>
    %c0_i32_18 = arith.constant 0 : i32
    %41 = vector.broadcast %c0_i32_18 : i32 to vector<1x256xi32>
    %42 = arith.cmpi slt, %38, %41 : vector<1x256xi32>
    %c0_i32_19 = arith.constant 0 : i32
    %43 = arith.cmpi slt, %36, %c0_i32_19 : i32
    %44 = vector.broadcast %43 : i1 to vector<1x256xi1>
    %45 = vector.broadcast %44 : vector<1x256xi1> to vector<1x256xi1>
    %46 = arith.xori %42, %45 : vector<1x256xi1>
    %47 = arith.andi %46, %40 : vector<1x256xi1>
    %48 = vector.broadcast %36 : i32 to vector<1x256xi32>
    %49 = arith.addi %38, %48 : vector<1x256xi32>
    %50 = arith.select %47, %49, %38 : vector<1x256xi1>, vector<1x256xi32>
    %c16_i32_20 = arith.constant 16 : i32
    %51 = vector.broadcast %c16_i32_20 : i32 to vector<1x256xi32>
    %52 = arith.cmpi sge, %34, %51 : vector<1x256xi32>
    %c240_i32 = arith.constant 240 : i32
    %53 = vector.broadcast %c240_i32 : i32 to vector<1x256xi32>
    %54 = arith.cmpi slt, %34, %53 : vector<1x256xi32>
    %c1_i32_21 = arith.constant 1 : i32
    %55 = vector.broadcast %c1_i32_21 : i32 to vector<1x256xi32>
    %56 = arith.cmpi sge, %50, %55 : vector<1x256xi32>
    %c14_i32 = arith.constant 14 : i32
    %57 = vector.broadcast %c14_i32 : i32 to vector<1x256xi32>
    %58 = arith.cmpi sle, %50, %57 : vector<1x256xi32>
    %59 = vector.extract_strided_slice %17 {offsets = [0, 0], sizes = [8, 256], strides = [1, 1]} : vector<72x256xf32> to vector<8x256xf32>
    %c17_i32 = arith.constant 17 : i32
    %60 = tpu.dynamic_rotate %59 by %c17_i32 dim 1 : vector<8x256xf32>, i32 -> vector<8x256xf32>
    %61 = arith.andi %52, %56 : vector<1x256xi1>
    %cst_22 = arith.constant 0.000000e+00 : f32
    %62 = vector.shape_cast %61 : vector<1x256xi1> to vector<1x256xi1>
    %63 = vector.broadcast %62 : vector<1x256xi1> to vector<8x256xi1>
    %64 = vector.broadcast %cst_22 : f32 to vector<8x256xf32>
    %65 = arith.select %63, %60, %64 : vector<8x256xi1>, vector<8x256xf32>
    %66 = vector.extract_strided_slice %17 {offsets = [8, 0], sizes = [8, 256], strides = [1, 1]} : vector<72x256xf32> to vector<8x256xf32>
    %c16_i32_23 = arith.constant 16 : i32
    %67 = tpu.dynamic_rotate %66 by %c16_i32_23 dim 1 : vector<8x256xf32>, i32 -> vector<8x256xf32>
    %cst_24 = arith.constant 0.000000e+00 : f32
    %68 = vector.shape_cast %52 : vector<1x256xi1> to vector<1x256xi1>
    %69 = vector.broadcast %68 : vector<1x256xi1> to vector<8x256xi1>
    %70 = vector.broadcast %cst_24 : f32 to vector<8x256xf32>
    %71 = arith.select %69, %67, %70 : vector<8x256xi1>, vector<8x256xf32>
    %72 = arith.addf %65, %71 : vector<8x256xf32>
    %73 = vector.extract_strided_slice %17 {offsets = [16, 0], sizes = [8, 256], strides = [1, 1]} : vector<72x256xf32> to vector<8x256xf32>
    %c15_i32 = arith.constant 15 : i32
    %74 = tpu.dynamic_rotate %73 by %c15_i32 dim 1 : vector<8x256xf32>, i32 -> vector<8x256xf32>
    %75 = arith.andi %52, %58 : vector<1x256xi1>
    %cst_25 = arith.constant 0.000000e+00 : f32
    %76 = vector.shape_cast %75 : vector<1x256xi1> to vector<1x256xi1>
    %77 = vector.broadcast %76 : vector<1x256xi1> to vector<8x256xi1>
    %78 = vector.broadcast %cst_25 : f32 to vector<8x256xf32>
    %79 = arith.select %77, %74, %78 : vector<8x256xi1>, vector<8x256xf32>
    %80 = arith.addf %72, %79 : vector<8x256xf32>
    %81 = vector.extract_strided_slice %17 {offsets = [24, 0], sizes = [8, 256], strides = [1, 1]} : vector<72x256xf32> to vector<8x256xf32>
    %c1_i32_26 = arith.constant 1 : i32
    %82 = tpu.dynamic_rotate %81 by %c1_i32_26 dim 1 : vector<8x256xf32>, i32 -> vector<8x256xf32>
    %cst_27 = arith.constant 0.000000e+00 : f32
    %83 = vector.shape_cast %56 : vector<1x256xi1> to vector<1x256xi1>
    %84 = vector.broadcast %83 : vector<1x256xi1> to vector<8x256xi1>
    %85 = vector.broadcast %cst_27 : f32 to vector<8x256xf32>
    %86 = arith.select %84, %82, %85 : vector<8x256xi1>, vector<8x256xf32>
    %87 = arith.addf %80, %86 : vector<8x256xf32>
    %88 = vector.extract_strided_slice %17 {offsets = [32, 0], sizes = [8, 256], strides = [1, 1]} : vector<72x256xf32> to vector<8x256xf32>
    %89 = arith.addf %87, %88 : vector<8x256xf32>
    %90 = vector.extract_strided_slice %17 {offsets = [40, 0], sizes = [8, 256], strides = [1, 1]} : vector<72x256xf32> to vector<8x256xf32>
    %c255_i32 = arith.constant 255 : i32
    %91 = tpu.dynamic_rotate %90 by %c255_i32 dim 1 : vector<8x256xf32>, i32 -> vector<8x256xf32>
    %cst_28 = arith.constant 0.000000e+00 : f32
    %92 = vector.shape_cast %58 : vector<1x256xi1> to vector<1x256xi1>
    %93 = vector.broadcast %92 : vector<1x256xi1> to vector<8x256xi1>
    %94 = vector.broadcast %cst_28 : f32 to vector<8x256xf32>
    %95 = arith.select %93, %91, %94 : vector<8x256xi1>, vector<8x256xf32>
    %96 = arith.addf %89, %95 : vector<8x256xf32>
    %97 = vector.extract_strided_slice %17 {offsets = [48, 0], sizes = [8, 256], strides = [1, 1]} : vector<72x256xf32> to vector<8x256xf32>
    %c241_i32 = arith.constant 241 : i32
    %98 = tpu.dynamic_rotate %97 by %c241_i32 dim 1 : vector<8x256xf32>, i32 -> vector<8x256xf32>
    %99 = arith.andi %54, %56 : vector<1x256xi1>
    %cst_29 = arith.constant 0.000000e+00 : f32
    %100 = vector.shape_cast %99 : vector<1x256xi1> to vector<1x256xi1>
    %101 = vector.broadcast %100 : vector<1x256xi1> to vector<8x256xi1>
    %102 = vector.broadcast %cst_29 : f32 to vector<8x256xf32>
    %103 = arith.select %101, %98, %102 : vector<8x256xi1>, vector<8x256xf32>
    %104 = arith.addf %96, %103 : vector<8x256xf32>
    %105 = vector.extract_strided_slice %17 {offsets = [56, 0], sizes = [8, 256], strides = [1, 1]} : vector<72x256xf32> to vector<8x256xf32>
    %c240_i32_30 = arith.constant 240 : i32
    %106 = tpu.dynamic_rotate %105 by %c240_i32_30 dim 1 : vector<8x256xf32>, i32 -> vector<8x256xf32>
    %cst_31 = arith.constant 0.000000e+00 : f32
    %107 = vector.shape_cast %54 : vector<1x256xi1> to vector<1x256xi1>
    %108 = vector.broadcast %107 : vector<1x256xi1> to vector<8x256xi1>
    %109 = vector.broadcast %cst_31 : f32 to vector<8x256xf32>
    %110 = arith.select %108, %106, %109 : vector<8x256xi1>, vector<8x256xf32>
    %111 = arith.addf %104, %110 : vector<8x256xf32>
    %112 = vector.extract_strided_slice %17 {offsets = [64, 0], sizes = [8, 256], strides = [1, 1]} : vector<72x256xf32> to vector<8x256xf32>
    %c239_i32 = arith.constant 239 : i32
    %113 = tpu.dynamic_rotate %112 by %c239_i32 dim 1 : vector<8x256xf32>, i32 -> vector<8x256xf32>
    %114 = arith.andi %54, %58 : vector<1x256xi1>
    %cst_32 = arith.constant 0.000000e+00 : f32
    %115 = vector.shape_cast %114 : vector<1x256xi1> to vector<1x256xi1>
    %116 = vector.broadcast %115 : vector<1x256xi1> to vector<8x256xi1>
    %117 = vector.broadcast %cst_32 : f32 to vector<8x256xf32>
    %118 = arith.select %116, %113, %117 : vector<8x256xi1>, vector<8x256xf32>
    %119 = arith.addf %111, %118 : vector<8x256xf32>
    %c0_33 = arith.constant 0 : index
    %c0_34 = arith.constant 0 : index
    %120 = vector.load %arg6[%c0_33, %c0_34] : memref<8x1xf32, #tpu.memory_space<vmem>>, vector<8x1xf32>
    %121 = vector.broadcast %120 : vector<8x1xf32> to vector<8x256xf32>
    %122 = arith.mulf %119, %121 : vector<8x256xf32>
    %c0_35 = arith.constant 0 : index
    %c0_36 = arith.constant 0 : index
    %123 = vector.load %arg7[%c0_35, %c0_36] : memref<8x1xf32, #tpu.memory_space<vmem>>, vector<8x1xf32>
    %124 = vector.broadcast %123 : vector<8x1xf32> to vector<8x256xf32>
    %125 = arith.addf %122, %124 : vector<8x256xf32>
    %126 = arith.addf %125, %4 : vector<8x256xf32>
    %cst_37 = arith.constant 0.000000e+00 : f32
    %127 = vector.broadcast %cst_37 : f32 to vector<8x256xf32>
    %128 = arith.cmpf oge, %126, %127 : vector<8x256xf32>
    %cst_38 = arith.constant 0.00999999977 : f32
    %129 = vector.broadcast %cst_38 : f32 to vector<8x256xf32>
    %130 = arith.mulf %129, %126 : vector<8x256xf32>
    %131 = arith.select %128, %126, %130 : vector<8x256xi1>, vector<8x256xf32>
    %c0_39 = arith.constant 0 : index
    %c0_40 = arith.constant 0 : index
    %132 = vector.load %arg8[%c0_39, %c0_40] : memref<8x256xf32, #tpu.memory_space<vmem>>, vector<8x256xf32>
    tpu.vector_store %arg8[%c0_39, %c0_40], %131 {strides = array<i32>} : memref<8x256xf32, #tpu.memory_space<vmem>>, vector<8x256xf32>,
    return
  }
  func.func @transform_0(%arg0: i32) -> (i32, i32) {
    %c0_i32 = arith.constant 0 : i32
    %c0_i32_0 = arith.constant 0 : i32
    return %c0_i32, %arg0 : i32, i32
  }
  func.func @transform_1(%arg0: i32) -> (i32, i32) {
    %c0_i32 = arith.constant 0 : i32
    %c0_i32_0 = arith.constant 0 : i32
    %c0_i32_1 = arith.constant 0 : i32
    return %c0_i32, %c0_i32_0 : i32, i32
  }
  func.func @transform_2(%arg0: i32) -> (i32, i32) {
    %c0_i32 = arith.constant 0 : i32
    %c0_i32_0 = arith.constant 0 : i32
    %c0_i32_1 = arith.constant 0 : i32
    return %c0_i32, %c0_i32_0 : i32, i32
  }
  func.func @transform_3(%arg0: i32) -> (i32, i32) {
    %c0_i32 = arith.constant 0 : i32
    %c0_i32_0 = arith.constant 0 : i32
    %c0_i32_1 = arith.constant 0 : i32
    return %c0_i32, %c0_i32_0 : i32, i32
  }
  func.func @transform_4(%arg0: i32) -> (i32, i32) {
    %c0_i32 = arith.constant 0 : i32
    %c0_i32_0 = arith.constant 0 : i32
    %c0_i32_1 = arith.constant 0 : i32
    return %c0_i32, %c0_i32_0 : i32, i32
  }
  func.func @transform_5(%arg0: i32) -> (i32, i32) {
    %c0_i32 = arith.constant 0 : i32
    %c0_i32_0 = arith.constant 0 : i32
    %c0_i32_1 = arith.constant 0 : i32
    return %c0_i32, %c0_i32_0 : i32, i32
  }
  func.func @transform_6(%arg0: i32) -> (i32, i32) {
    %c0_i32 = arith.constant 0 : i32
    %c0_i32_0 = arith.constant 0 : i32
    %c0_i32_1 = arith.constant 0 : i32
    return %c0_i32, %c0_i32_0 : i32, i32
  }
  func.func @transform_7(%arg0: i32) -> (i32, i32) {
    %c0_i32 = arith.constant 0 : i32
    %c0_i32_0 = arith.constant 0 : i32
    return %c0_i32, %arg0 : i32, i32
  }
}

</mosaic_0001>

<llo_original>
// kernel: tpu_custom_call.1
$region0: #{tpu_custom_call.1}
  #allocation0 [shape = 'u32[]', space=smem, size = 0x4, offset = 0x4, fixed_abs, tag = 'smem constant byte address 0x4 - core index']
  #allocation1 [shape = 'u32[144,128]{1,0:T(1,128)}', space=vmem, size = 0x12000, scoped, tag = 'internal scratch']
  %s0 = inlined_call_operand.vmem [shape: f32[4,512], index: 0, kind: input, shape index: {}]
  %s1 = inlined_call_operand.vmem [shape: f32[16,4], index: 1, kind: input, shape index: {}]
  %s2 = inlined_call_operand.vmem [shape: f32[4,1], index: 2, kind: input, shape index: {}]
  %s3 = inlined_call_operand.vmem [shape: f32[4,1], index: 3, kind: input, shape index: {}]
  %s4 = inlined_call_operand.vmem [shape: f32[72,4], index: 4, kind: input, shape index: {}]
  %s5 = inlined_call_operand.vmem [shape: f32[8,1], index: 5, kind: input, shape index: {}]
  %s6 = inlined_call_operand.vmem [shape: f32[8,1], index: 6, kind: input, shape index: {}]
  %s7 = inlined_call_operand.hbm [shape: f32[8,512], index: 7, kind: output, shape index: {}]
  %s8 = sld [smem:[#allocation0]]
  $region61: #{tpu_custom_call.1} parent=0
    _
  %s10 = ssub.s32 1, %s8
  %s11 = scalar_select 0, %s10, %s8
  $region1: #{tpu_custom_call.1} parent=0
    #allocation2 [shape = 'u8[16384]{0}', space=vmem, size = 0x4000, scoped, tag = 'output window, operand 0']
    #allocation3 [shape = 's32[2]{0}', space=sflag, size = 0x8, scoped, tag = 'scoped memory for tpu_custom_call.1']
    %12 = vsyncpa [#allocation3], 0
    %s13 = scalar_lea.sflag [#allocation3], 1
    %14 = vsyncpa %s13, 0
    loop: start=0, step=1, limit=4
    $region2: #{tpu_custom_call.1} parent=1 // loop_pre_header
      _
    $region3: #{tpu_custom_call.1} parent=1 // loop_header
      %s16 = sphi 0, %s20
      %p17 = scmp.ge.s32.totalorder %s16, 4
      %s26 = sphi 0, %s28
      %s29 = sphi 0, %s26
      %s30 = sphi 0, %s29
      %s46 = sphi 0, %s30
      %s50 = sphi 0, %s50
      %s52 = sphi 0, %s50
      %s53 = sphi 0, %s52
      %s67 = sphi 0, %s53
      %s71 = sphi 0, %s71
      %s73 = sphi 0, %s71
      %s74 = sphi 0, %s73
      %s88 = sphi 0, %s74
      %s92 = sphi 0, %s92
      %s94 = sphi 0, %s92
      %s95 = sphi 0, %s94
      %s109 = sphi 0, %s95
      %s113 = sphi 0, %s113
      %s115 = sphi 0, %s113
      %s116 = sphi 0, %s115
      %s130 = sphi 0, %s116
      %s134 = sphi 0, %s134
      %s136 = sphi 0, %s134
      %s137 = sphi 0, %s136
      %s151 = sphi 0, %s137
      %s155 = sphi 0, %s155
      %s157 = sphi 0, %s155
      %s158 = sphi 0, %s157
      %s172 = sphi 0, %s158
      %s178 = sphi 0, %s180
      %s181 = sphi 0, %s178
      %s182 = sphi 0, %s181
      %s198 = sphi 0, %s182
    $region4: #{tpu_custom_call.1} parent=1 // loop_header_branch
      %19 = sbr.rel (%p17) target = $region8
    $region5: #{tpu_custom_call.1} parent=1 // loop_body
      %s21 = ssub.s32 %s16, 1
      %s22 = ssub.s32 %s16, 2
      %s23 = sadd.s32 %s16, 1
      %s24 = ssub.s32 %s16, %s23
      %p25 = scmp.eq.s32.totalorder %s24, 0
      %s27 = sadd.s32 %s26, 1
      %s28 = scalar_select %p25, %s26, %s27
      %p31 = pneg %p25
      %p32 = scmp.eq.s32.totalorder %s16, 1
      %p33 = por %p31, %p32
      %p34 = scmp.ne.s32.totalorder %s26, %s29
      %p35 = scmp.eq.s32.totalorder %s16, 0
      %p36 = por %p34, %p35
      %p37 = scmp.ne.s32.totalorder %s26, %s29
      %p38 = scmp.eq.s32.totalorder %s21, 1
      %p39 = por %p37, %p38
      %p40 = scmp.ne.s32.totalorder %s29, %s30
      %p41 = scmp.eq.s32.totalorder %s21, 0
      %p42 = por %p40, %p41
      %p43 = scmp.ne.s32.totalorder %s29, %s30
      %p44 = scmp.eq.s32.totalorder %s22, 1
      %p45 = por %p43, %p44
      %p47 = scmp.ne.s32.totalorder %s30, %s46
      %p48 = scmp.eq.s32.totalorder %s22, 0
      %p49 = por %p47, %p48
      %s51 = sadd.s32 %s50, 1
      %p54 = scmp.eq.s32.totalorder %s16, 1
      %p55 = scmp.ne.s32.totalorder %s50, %s52
      %p56 = scmp.eq.s32.totalorder %s16, 0
      %p57 = por %p55, %p56
      %p58 = scmp.ne.s32.totalorder %s50, %s52
      %p59 = scmp.eq.s32.totalorder %s21, 1
      %p60 = por %p58, %p59
      %p61 = scmp.ne.s32.totalorder %s52, %s53
      %p62 = scmp.eq.s32.totalorder %s21, 0
      %p63 = por %p61, %p62
      %p64 = scmp.ne.s32.totalorder %s52, %s53
      %p65 = scmp.eq.s32.totalorder %s22, 1
      %p66 = por %p64, %p65
      %p68 = scmp.ne.s32.totalorder %s53, %s67
      %p69 = scmp.eq.s32.totalorder %s22, 0
      %p70 = por %p68, %p69
      %s72 = sadd.s32 %s71, 1
      %p75 = scmp.eq.s32.totalorder %s16, 1
      %p76 = scmp.ne.s32.totalorder %s71, %s73
      %p77 = scmp.eq.s32.totalorder %s16, 0
      %p78 = por %p76, %p77
      %p79 = scmp.ne.s32.totalorder %s71, %s73
      %p80 = scmp.eq.s32.totalorder %s21, 1
      %p81 = por %p79, %p80
      %p82 = scmp.ne.s32.totalorder %s73, %s74
      %p83 = scmp.eq.s32.totalorder %s21, 0
      %p84 = por %p82, %p83
      %p85 = scmp.ne.s32.totalorder %s73, %s74
      %p86 = scmp.eq.s32.totalorder %s22, 1
      %p87 = por %p85, %p86
      %p89 = scmp.ne.s32.totalorder %s74, %s88
      %p90 = scmp.eq.s32.totalorder %s22, 0
      %p91 = por %p89, %p90
      %s93 = sadd.s32 %s92, 1
      %p96 = scmp.eq.s32.totalorder %s16, 1
      %p97 = scmp.ne.s32.totalorder %s92, %s94
      %p98 = scmp.eq.s32.totalorder %s16, 0
      %p99 = por %p97, %p98
      %p100 = scmp.ne.s32.totalorder %s92, %s94
      %p101 = scmp.eq.s32.totalorder %s21, 1
      %p102 = por %p100, %p101
      %p103 = scmp.ne.s32.totalorder %s94, %s95
      %p104 = scmp.eq.s32.totalorder %s21, 0
      %p105 = por %p103, %p104
      %p106 = scmp.ne.s32.totalorder %s94, %s95
      %p107 = scmp.eq.s32.totalorder %s22, 1
      %p108 = por %p106, %p107
      %p110 = scmp.ne.s32.totalorder %s95, %s109
      %p111 = scmp.eq.s32.totalorder %s22, 0
      %p112 = por %p110, %p111
      %s114 = sadd.s32 %s113, 1
      %p117 = scmp.eq.s32.totalorder %s16, 1
      %p118 = scmp.ne.s32.totalorder %s113, %s115
      %p119 = scmp.eq.s32.totalorder %s16, 0
      %p120 = por %p118, %p119
      %p121 = scmp.ne.s32.totalorder %s113, %s115
      %p122 = scmp.eq.s32.totalorder %s21, 1
      %p123 = por %p121, %p122
      %p124 = scmp.ne.s32.totalorder %s115, %s116
      %p125 = scmp.eq.s32.totalorder %s21, 0
      %p126 = por %p124, %p125
      %p127 = scmp.ne.s32.totalorder %s115, %s116
      %p128 = scmp.eq.s32.totalorder %s22, 1
      %p129 = por %p127, %p128
      %p131 = scmp.ne.s32.totalorder %s116, %s130
      %p132 = scmp.eq.s32.totalorder %s22, 0
      %p133 = por %p131, %p132
      %s135 = sadd.s32 %s134, 1
      %p138 = scmp.eq.s32.totalorder %s16, 1
      %p139 = scmp.ne.s32.totalorder %s134, %s136
      %p140 = scmp.eq.s32.totalorder %s16, 0
      %p141 = por %p139, %p140
      %p142 = scmp.ne.s32.totalorder %s134, %s136
      %p143 = scmp.eq.s32.totalorder %s21, 1
      %p144 = por %p142, %p143
      %p145 = scmp.ne.s32.totalorder %s136, %s137
      %p146 = scmp.eq.s32.totalorder %s21, 0
      %p147 = por %p145, %p146
      %p148 = scmp.ne.s32.totalorder %s136, %s137
      %p149 = scmp.eq.s32.totalorder %s22, 1
      %p150 = por %p148, %p149
      %p152 = scmp.ne.s32.totalorder %s137, %s151
      %p153 = scmp.eq.s32.totalorder %s22, 0
      %p154 = por %p152, %p153
      %s156 = sadd.s32 %s155, 1
      %p159 = scmp.eq.s32.totalorder %s16, 1
      %p160 = scmp.ne.s32.totalorder %s155, %s157
      %p161 = scmp.eq.s32.totalorder %s16, 0
      %p162 = por %p160, %p161
      %p163 = scmp.ne.s32.totalorder %s155, %s157
      %p164 = scmp.eq.s32.totalorder %s21, 1
      %p165 = por %p163, %p164
      %p166 = scmp.ne.s32.totalorder %s157, %s158
      %p167 = scmp.eq.s32.totalorder %s21, 0
      %p168 = por %p166, %p167
      %p169 = scmp.ne.s32.totalorder %s157, %s158
      %p170 = scmp.eq.s32.totalorder %s22, 1
      %p171 = por %p169, %p170
      %p173 = scmp.ne.s32.totalorder %s158, %s172
      %p174 = scmp.eq.s32.totalorder %s22, 0
      %p175 = por %p173, %p174
      %s176 = ssub.s32 %s16, %s23
      %p177 = scmp.eq.s32.totalorder %s176, 0
      %s179 = sadd.s32 %s178, 1
      %s180 = scalar_select %p177, %s178, %s179
      %p183 = pneg %p177
      %p184 = scmp.eq.s32.totalorder %s16, 1
      %p185 = por %p183, %p184
      %p186 = scmp.ne.s32.totalorder %s178, %s181
      %p187 = scmp.eq.s32.totalorder %s16, 0
      %p188 = por %p186, %p187
      %p189 = scmp.ne.s32.totalorder %s178, %s181
      %p190 = scmp.eq.s32.totalorder %s21, 1
      %p191 = por %p189, %p190
      %p192 = scmp.ne.s32.totalorder %s181, %s182
      %p193 = scmp.eq.s32.totalorder %s21, 0
      %p194 = por %p192, %p193
      %p195 = scmp.ne.s32.totalorder %s181, %s182
      %p196 = scmp.eq.s32.totalorder %s22, 1
      %p197 = por %p195, %p196
      %p199 = scmp.ne.s32.totalorder %s182, %s198
      %p200 = scmp.eq.s32.totalorder %s22, 0
      %p201 = por %p199, %p200
      %p202 = scmp.le.s32.totalorder 1, %s16
      %p203 = scmp.lt.s32.totalorder %s16, 3
      %p204 = pnand %p202, %p203
      %p205 = pneg %p204
      // Predicated region
      $region9: #{tpu_custom_call.1} parent=5 // pred_check
        _
      $region10: #{tpu_custom_call.1} parent=5 // pred_check_branch
        %207 = sbr.rel (%p204) target = $region12
      $region11: #{tpu_custom_call.1} parent=5 // pred_region
        %s208 = ssub.s32 %s16, 1
        // Predicated region
        $region13: #{tpu_custom_call.1} parent=11 // pred_check
          %p209 = pneg %p63
        $region14: #{tpu_custom_call.1} parent=11 // pred_check_branch
          %211 = sbr.rel (%p209) target = $region16
        $region15: #{tpu_custom_call.1} parent=11 // pred_region
          _
        $region16: #{tpu_custom_call.1} parent=11 // pred_fallthru
          _
        // Predicated region
        $region17: #{tpu_custom_call.1} parent=11 // pred_check
          %p212 = pneg %p84
        $region18: #{tpu_custom_call.1} parent=11 // pred_check_branch
          %214 = sbr.rel (%p212) target = $region20
        $region19: #{tpu_custom_call.1} parent=11 // pred_region
          _
        $region20: #{tpu_custom_call.1} parent=11 // pred_fallthru
          _
        // Predicated region
        $region21: #{tpu_custom_call.1} parent=11 // pred_check
          %p215 = pneg %p105
        $region22: #{tpu_custom_call.1} parent=11 // pred_check_branch
          %217 = sbr.rel (%p215) target = $region24
        $region23: #{tpu_custom_call.1} parent=11 // pred_region
          _
        $region24: #{tpu_custom_call.1} parent=11 // pred_fallthru
          _
        // Predicated region
        $region25: #{tpu_custom_call.1} parent=11 // pred_check
          %p218 = pneg %p126
        $region26: #{tpu_custom_call.1} parent=11 // pred_check_branch
          %220 = sbr.rel (%p218) target = $region28
        $region27: #{tpu_custom_call.1} parent=11 // pred_region
          _
        $region28: #{tpu_custom_call.1} parent=11 // pred_fallthru
          _
        // Predicated region
        $region29: #{tpu_custom_call.1} parent=11 // pred_check
          %p221 = pneg %p147
        $region30: #{tpu_custom_call.1} parent=11 // pred_check_branch
          %223 = sbr.rel (%p221) target = $region32
        $region31: #{tpu_custom_call.1} parent=11 // pred_region
          _
        $region32: #{tpu_custom_call.1} parent=11 // pred_fallthru
          _
        // Predicated region
        $region33: #{tpu_custom_call.1} parent=11 // pred_check
          %p224 = pneg %p168
        $region34: #{tpu_custom_call.1} parent=11 // pred_check_branch
          %226 = sbr.rel (%p224) target = $region36
        $region35: #{tpu_custom_call.1} parent=11 // pred_region
          _
        $region36: #{tpu_custom_call.1} parent=11 // pred_fallthru
          _
      $region12: #{tpu_custom_call.1} parent=5 // pred_fallthru
        _
      %p227 = scmp.lt.s32.totalorder %s16, 2
      // Predicated region
      $region37: #{tpu_custom_call.1} parent=5 // pred_check
        %p228 = pneg %p227
      $region38: #{tpu_custom_call.1} parent=5 // pred_check_branch
        %230 = sbr.rel (%p228) target = $region40
      $region39: #{tpu_custom_call.1} parent=5 // pred_region
        // Predicated region
        $region41: #{tpu_custom_call.1} parent=39 // pred_check
          %p231 = pneg %p36
        $region42: #{tpu_custom_call.1} parent=39 // pred_check_branch
          %233 = sbr.rel (%p231) target = $region44
        $region43: #{tpu_custom_call.1} parent=39 // pred_region
          %s234 = smul.u32 2, %s16
          %p235 = scmp.lt.s32.totalorder %s234, 3
          %s236 = scalar_select %p235, %s234, 3
          %s237 = smul.addr %s236, 4
          %s238 = scalar_lea.vmem %s0, %s237
          %s239 = smul.u32 2, %s16
        $region44: #{tpu_custom_call.1} parent=39 // pred_fallthru
          _
      $region40: #{tpu_custom_call.1} parent=5 // pred_fallthru
        _
      %p240 = scmp.le.s32.totalorder 1, %s16
      %p241 = scmp.lt.s32.totalorder %s16, 3
      %p242 = pnand %p240, %p241
      %p243 = pneg %p242
      // Predicated region
      $region45: #{tpu_custom_call.1} parent=5 // pred_check
        _
      $region46: #{tpu_custom_call.1} parent=5 // pred_check_branch
        %245 = sbr.rel (%p242) target = $region48
      $region47: #{tpu_custom_call.1} parent=5 // pred_region
        %s246 = ssub.s32 %s16, 1
        %s247 = smul.u32 2, %s21
        %p248 = scmp.lt.s32.totalorder %s247, 3
        %s249 = scalar_select %p248, %s247, 3
        %s250 = smul.addr %s249, 4
        %s251 = scalar_lea.vmem %s0, %s250
        %p252 = pneg %p42
        %p253 = pneg %p39
        %p254 = pneg %p63
        %p255 = pneg %p60
        %p256 = pneg %p84
        %p257 = pneg %p81
        %p258 = pneg %p105
        %p259 = pneg %p102
        %p260 = pneg %p126
        %p261 = pneg %p123
        %p262 = pneg %p147
        %p263 = pneg %p144
        %p264 = pneg %p168
        %p265 = pneg %p165
        %p266 = pneg %p194
        %p267 = pneg %p191
        %s268 = sand.u32 %s181, 1
        %s269 = scalar_lea.sflag [#allocation3], %s268
        %s270 = sand.u32 %s181, 1
        %s271 = smul.addr %s270, 16
        %s272 = scalar_lea.vmem [#allocation2], %s271
        %s273 = smul.u32 2, %s21
        %p274 = scmp.lt.s32.totalorder %s273, 3
        %s275 = scalar_select %p274, %s273, 3
        %s276 = smul.addr %s275, 4
        %s277 = scalar_lea.vmem %s0, %s276
        %s278 = smul.u32 2, %s21
        %s279 = smul.u32 2, %s21
        %v280 = vld [vmem:[%s277] sm:$0xff]
        %v281 = vld [vmem:[%s1] sm:$0xff]
        %v282 = vld [vmem:[%s1 + $0x8] sm:$0xff]
        %v284 = vcombine.high %v280, %v280
        %vm285 = vcmask 31744
        %v287 = vsel %vm285, %v281, 0
        %v290 = vsel %vm285, %v282, 0
        %vm292 = vcmask 1043456
        %v293 = vsel %vm292, %v280, 0
        %v295 = vsel %vm292, %v284, 0
        %297 = vmatprep.subr.mxu0 %v295
        %298 = vmatpush1.msra.mxu0 %v293
        %299 = vmatprep.subr.mxu0 0.0
        %300 = vmatpush1.msra.mxu0 0.0
        %301 = vmatprep.subr.mxu0 0.0
        %302 = vmatpush1.msra.mxu0 0.0
        %303 = vmatprep.subr.mxu0 0.0
        %304 = vmatpush1.msra.mxu0 0.0
        %305 = vmatprep.subr.mxu0 0.0
        %306 = vmatpush1.msra.mxu0 0.0
        %307 = vmatprep.subr.mxu0 0.0
        %308 = vmatpush1.msra.mxu0 0.0
        %309 = vmatprep.subr.mxu0 0.0
        %310 = vmatpush1.msra.mxu0 0.0
        %311 = vmatprep.subr.mxu0 0.0
        %312 = vmatpush1.msra.mxu0 0.0
        %313 = vmatprep.subr.mxu0 0.0
        %314 = vmatpush1.msra.mxu0 0.0
        %315 = vmatprep.subr.mxu0 0.0
        %316 = vmatpush1.msra.mxu0 0.0
        %317 = vmatprep.subr.mxu0 0.0
        %318 = vmatpush1.msra.mxu0 0.0
        %319 = vmatprep.subr.mxu0 0.0
        %320 = vmatpush1.msra.mxu0 0.0
        %321 = vmatprep.subr.mxu0 0.0
        %322 = vmatpush1.msra.mxu0 0.0
        %323 = vmatprep.subr.mxu0 0.0
        %324 = vmatpush1.msra.mxu0 0.0
        %325 = vmatprep.subr.mxu0 0.0
        %326 = vmatpush1.msra.mxu0 0.0
        %327 = vmatprep.subr.mxu0 0.0
        %328 = vmatpush1.msra.mxu0 0.0
        %329 = vmatprep.subr.mxu0 0.0
        %330 = vmatpush1.msra.mxu0 0.0
        %331 = vmatprep.subr.mxu0 0.0
        %332 = vmatpush1.msra.mxu0 0.0
        %333 = vmatprep.subr.mxu0 0.0
        %334 = vmatpush1.msra.mxu0 0.0
        %335 = vmatprep.subr.mxu0 0.0
        %336 = vmatpush1.msra.mxu0 0.0
        %337 = vmatprep.subr.mxu0 0.0
        %338 = vmatpush1.msra.mxu0 0.0
        %339 = vmatprep.subr.mxu0 0.0
        %340 = vmatpush1.msra.mxu0 0.0
        %341 = vmatprep.subr.mxu0 0.0
        %342 = vmatpush1.msra.mxu0 0.0
        %343 = vmatprep.subr.mxu0 0.0
        %344 = vmatpush1.msra.mxu0 0.0
        %345 = vmatprep.subr.mxu0 0.0
        %346 = vmatpush1.msra.mxu0 0.0
        %347 = vmatprep.subr.mxu0 0.0
        %348 = vmatpush1.msra.mxu0 0.0
        %349 = vmatprep.subr.mxu0 0.0
        %350 = vmatpush1.msra.mxu0 0.0
        %351 = vmatprep.subr.mxu0 0.0
        %352 = vmatpush1.msra.mxu0 0.0
        %353 = vmatprep.subr.mxu0 0.0
        %354 = vmatpush1.msra.mxu0 0.0
        %355 = vmatprep.subr.mxu0 0.0
        %356 = vmatpush1.msra.mxu0 0.0
        %357 = vmatprep.subr.mxu0 0.0
        %358 = vmatpush1.msra.mxu0 0.0
        %359 = vmatprep.subr.mxu0 0.0
        %360 = vmatpush1.msra.mxu0 0.0
        %361 = vmatprep.mubr.f32.mxu0 0.0
        %362 = vmatmul.mubr.f32.gmra.mrb[0].mxu0 %v287
        %v363 = vpop.f32.mrb[0].mxu0
        %v364 = vadd.f32 0.0, %v363
        %v365 = vpop.f32.mrb[0].mxu0
        %v366 = vadd.f32 0.0, %v365
        %367 = vmatprep.mubr.f32.mxu0 0.0
        %368 = vmatmul.mubr.f32.gmra.mrb[0].mxu0 %v290
        %v369 = vpop.f32.mrb[0].mxu0
        %v370 = vadd.f32 0.0, %v369
        %v371 = vpop.f32.mrb[0].mxu0
        %v372 = vadd.f32 0.0, %v371
        %373 = vdwg.mxu0
        %v374 = vld [vmem:[%s2] sm:$0xf]
        %376 = vset.pattern.permute.xlu0 0
        %377 = vperm.xlu0 %376, %v374
        %v378 = vpop.permute.xlu0 %377
        %v380 = vmul.f32 %v364, %v378
        %v381 = vmul.f32 %v366, %v378
        %v382 = vld [vmem:[%s3] sm:$0xf]
        %384 = vset.pattern.permute.xlu0 0
        %385 = vperm.xlu0 %384, %v382
        %v386 = vpop.permute.xlu0 %385
        %v388 = vadd.f32 %v380, %v386
        %v389 = vadd.f32 %v381, %v386
        %vm390 = vcmp.ge.f32.partialorder %v388, 0.0
        %vm391 = vcmp.ge.f32.partialorder %v389, 0.0
        %v392 = vmul.f32 %v388, 0.01
        %v393 = vmul.f32 %v389, 0.01
        %v394 = vsel %vm390, %v388, %v392
        %v395 = vsel %vm391, %v389, %v393
        %v396 = vld [vmem:[%s4] sm:$0xff]
        %v397 = vld [vmem:[%s4 + $0x8] sm:$0xff]
        %v398 = vld [vmem:[%s4 + $0x10] sm:$0xff]
        %v399 = vld [vmem:[%s4 + $0x18] sm:$0xff]
        %v400 = vld [vmem:[%s4 + $0x20] sm:$0xff]
        %v401 = vld [vmem:[%s4 + $0x28] sm:$0xff]
        %v402 = vld [vmem:[%s4 + $0x30] sm:$0xff]
        %v403 = vld [vmem:[%s4 + $0x38] sm:$0xff]
        %v404 = vld [vmem:[%s4 + $0x40] sm:$0xff]
        %v406 = vsel %vm285, %v396, 0
        %v409 = vsel %vm285, %v397, 0
        %v412 = vsel %vm285, %v398, 0
        %v415 = vsel %vm285, %v399, 0
        %v418 = vsel %vm285, %v400, 0
        %v421 = vsel %vm285, %v401, 0
        %v424 = vsel %vm285, %v402, 0
        %v427 = vsel %vm285, %v403, 0
        %v430 = vsel %vm285, %v404, 0
        %v433 = vsel %vm292, %v394, 0
        %v436 = vsel %vm292, %v395, 0
        %438 = vmatprep.subr.mxu0 %v436
        %439 = vmatpush1.msra.mxu0 %v433
        %440 = vmatprep.subr.mxu0 0.0
        %441 = vmatpush1.msra.mxu0 0.0
        %442 = vmatprep.subr.mxu0 0.0
        %443 = vmatpush1.msra.mxu0 0.0
        %444 = vmatprep.subr.mxu0 0.0
        %445 = vmatpush1.msra.mxu0 0.0
        %446 = vmatprep.subr.mxu0 0.0
        %447 = vmatpush1.msra.mxu0 0.0
        %448 = vmatprep.subr.mxu0 0.0
        %449 = vmatpush1.msra.mxu0 0.0
        %450 = vmatprep.subr.mxu0 0.0
        %451 = vmatpush1.msra.mxu0 0.0
        %452 = vmatprep.subr.mxu0 0.0
        %453 = vmatpush1.msra.mxu0 0.0
        %454 = vmatprep.subr.mxu0 0.0
        %455 = vmatpush1.msra.mxu0 0.0
        %456 = vmatprep.subr.mxu0 0.0
        %457 = vmatpush1.msra.mxu0 0.0
        %458 = vmatprep.subr.mxu0 0.0
        %459 = vmatpush1.msra.mxu0 0.0
        %460 = vmatprep.subr.mxu0 0.0
        %461 = vmatpush1.msra.mxu0 0.0
        %462 = vmatprep.subr.mxu0 0.0
        %463 = vmatpush1.msra.mxu0 0.0
        %464 = vmatprep.subr.mxu0 0.0
        %465 = vmatpush1.msra.mxu0 0.0
        %466 = vmatprep.subr.mxu0 0.0
        %467 = vmatpush1.msra.mxu0 0.0
        %468 = vmatprep.subr.mxu0 0.0
        %469 = vmatpush1.msra.mxu0 0.0
        %470 = vmatprep.subr.mxu0 0.0
        %471 = vmatpush1.msra.mxu0 0.0
        %472 = vmatprep.subr.mxu0 0.0
        %473 = vmatpush1.msra.mxu0 0.0
        %474 = vmatprep.subr.mxu0 0.0
        %475 = vmatpush1.msra.mxu0 0.0
        %476 = vmatprep.subr.mxu0 0.0
        %477 = vmatpush1.msra.mxu0 0.0
        %478 = vmatprep.subr.mxu0 0.0
        %479 = vmatpush1.msra.mxu0 0.0
        %480 = vmatprep.subr.mxu0 0.0
        %481 = vmatpush1.msra.mxu0 0.0
        %482 = vmatprep.subr.mxu0 0.0
        %483 = vmatpush1.msra.mxu0 0.0
        %484 = vmatprep.subr.mxu0 0.0
        %485 = vmatpush1.msra.mxu0 0.0
        %486 = vmatprep.subr.mxu0 0.0
        %487 = vmatpush1.msra.mxu0 0.0
        %488 = vmatprep.subr.mxu0 0.0
        %489 = vmatpush1.msra.mxu0 0.0
        %490 = vmatprep.subr.mxu0 0.0
        %491 = vmatpush1.msra.mxu0 0.0
        %492 = vmatprep.subr.mxu0 0.0
        %493 = vmatpush1.msra.mxu0 0.0
        %494 = vmatprep.subr.mxu0 0.0
        %495 = vmatpush1.msra.mxu0 0.0
        %496 = vmatprep.subr.mxu0 0.0
        %497 = vmatpush1.msra.mxu0 0.0
        %498 = vmatprep.subr.mxu0 0.0
        %499 = vmatpush1.msra.mxu0 0.0
        %500 = vmatprep.subr.mxu0 0.0
        %501 = vmatpush1.msra.mxu0 0.0
        %502 = vmatprep.mubr.f32.mxu0 0.0
        %503 = vmatmul.mubr.f32.gmra.mrb[0].mxu0 %v406
        %v504 = vpop.f32.mrb[0].mxu0
        %v505 = vadd.f32 0.0, %v504
        %v506 = vpop.f32.mrb[0].mxu0
        %v507 = vadd.f32 0.0, %v506
        %508 = vmatprep.mubr.f32.mxu0 0.0
        %509 = vmatmul.mubr.f32.gmra.mrb[0].mxu0 %v409
        %v510 = vpop.f32.mrb[0].mxu0
        %v511 = vadd.f32 0.0, %v510
        %v512 = vpop.f32.mrb[0].mxu0
        %v513 = vadd.f32 0.0, %v512
        %514 = vmatprep.mubr.f32.mxu0 0.0
        %515 = vmatmul.mubr.f32.gmra.mrb[0].mxu0 %v412
        %v516 = vpop.f32.mrb[0].mxu0
        %v517 = vadd.f32 0.0, %v516
        %v518 = vpop.f32.mrb[0].mxu0
        %v519 = vadd.f32 0.0, %v518
        %520 = vmatprep.mubr.f32.mxu0 0.0
        %521 = vmatmul.mubr.f32.gmra.mrb[0].mxu0 %v415
        %v522 = vpop.f32.mrb[0].mxu0
        %v523 = vadd.f32 0.0, %v522
        %v524 = vpop.f32.mrb[0].mxu0
        %v525 = vadd.f32 0.0, %v524
        %526 = vmatprep.mubr.f32.mxu0 0.0
        %527 = vmatmul.mubr.f32.gmra.mrb[0].mxu0 %v418
        %v528 = vpop.f32.mrb[0].mxu0
        %v529 = vadd.f32 0.0, %v528
        %v530 = vpop.f32.mrb[0].mxu0
        %v531 = vadd.f32 0.0, %v530
        %532 = vmatprep.mubr.f32.mxu0 0.0
        %533 = vmatmul.mubr.f32.gmra.mrb[0].mxu0 %v421
        %v534 = vpop.f32.mrb[0].mxu0
        %v535 = vadd.f32 0.0, %v534
        %v536 = vpop.f32.mrb[0].mxu0
        %v537 = vadd.f32 0.0, %v536
        %538 = vmatprep.mubr.f32.mxu0 0.0
        %539 = vmatmul.mubr.f32.gmra.mrb[0].mxu0 %v424
        %v540 = vpop.f32.mrb[0].mxu0
        %v541 = vadd.f32 0.0, %v540
        %v542 = vpop.f32.mrb[0].mxu0
        %v543 = vadd.f32 0.0, %v542
        %544 = vmatprep.mubr.f32.mxu0 0.0
        %545 = vmatmul.mubr.f32.gmra.mrb[0].mxu0 %v427
        %v546 = vpop.f32.mrb[0].mxu0
        %v547 = vadd.f32 0.0, %v546
        %v548 = vpop.f32.mrb[0].mxu0
        %v549 = vadd.f32 0.0, %v548
        %550 = vmatprep.mubr.f32.mxu0 0.0
        %551 = vmatmul.mubr.f32.gmra.mrb[0].mxu0 %v430
        %v552 = vpop.f32.mrb[0].mxu0
        %v553 = vadd.f32 0.0, %v552
        %v554 = vpop.f32.mrb[0].mxu0
        %v555 = vadd.f32 0.0, %v554
        %556 = vdwg.mxu0
        %v557 = vlaneseq
        %v558 = vand.u32 %v557, 127
        %v559 = vadd.s32 %v558, 128
        %vm560 = vcmp.lt.s32.totalorder %v558, 0
        %v561 = vsub.s32 0, %v558
        %v562 = vsel %vm560, %v561, %v558
        %v563 = vshrl.u32 %v562, 8
        %v564 = vand.u32 %v562, 255
        %v565 = vsub.s32 0, %v564
        %v566 = vsel %vm560, %v565, %v564
        %vm567 = vcmp.lt.s32.totalorder %v559, 0
        %v568 = vsub.s32 0, %v559
        %v569 = vsel %vm567, %v568, %v559
        %v570 = vshrl.u32 %v569, 8
        %v571 = vand.u32 %v569, 255
        %v572 = vsub.s32 0, %v571
        %v573 = vsel %vm567, %v572, %v571
        %vm574 = vcmp.ne.s32.totalorder %v566, 0
        %vm575 = vcmp.ne.s32.totalorder %v573, 0
        %vm576 = vcmp.lt.s32.totalorder %v566, 0
        %vm577 = vcmp.lt.s32.totalorder %v573, 0
        %vm578 = vmand %vm576, %vm574
        %vm579 = vmand %vm577, %vm575
        %v580 = vadd.s32 %v566, 256
        %v581 = vadd.s32 %v573, 256
        %v582 = vsel %vm578, %v580, %v566
        %v583 = vsel %vm579, %v581, %v573
        %vm584 = vcmp.lt.s32.totalorder %v582, 0
        %v585 = vsub.s32 0, %v582
        %v586 = vsel %vm584, %v585, %v582
        %v587 = vshrl.u32 %v586, 4
        %v588 = vand.u32 %v586, 15
        %v589 = vsub.s32 0, %v588
        %v590 = vsel %vm584, %v589, %v588
        %vm591 = vcmp.lt.s32.totalorder %v583, 0
        %v592 = vsub.s32 0, %v583
        %v593 = vsel %vm591, %v592, %v583
        %v594 = vshrl.u32 %v593, 4
        %v595 = vand.u32 %v593, 15
        %v596 = vsub.s32 0, %v595
        %v597 = vsel %vm591, %v596, %v595
        %vm598 = vcmp.ne.s32.totalorder %v590, 0
        %vm599 = vcmp.ne.s32.totalorder %v597, 0
        %vm600 = vcmp.lt.s32.totalorder %v590, 0
        %vm601 = vcmp.lt.s32.totalorder %v597, 0
        %vm602 = vmand %vm600, %vm598
        %vm603 = vmand %vm601, %vm599
        %v604 = vadd.s32 %v590, 16
        %v605 = vadd.s32 %v597, 16
        %v606 = vsel %vm602, %v604, %v590
        %v607 = vsel %vm603, %v605, %v597
        %vm608 = vcmp.ge.s32.totalorder %v582, 16
        %vm609 = vcmp.ge.s32.totalorder %v583, 16
        %vm610 = vcmp.lt.s32.totalorder %v582, 240
        %vm611 = vcmp.lt.s32.totalorder %v583, 240
        %vm612 = vcmp.ge.s32.totalorder %v606, 1
        %vm613 = vcmp.ge.s32.totalorder %v607, 1
        %vm614 = vcmp.le.s32.totalorder %v606, 14
        %vm615 = vcmp.le.s32.totalorder %v607, 14
        %616 = vrot.lane.b32.xlu0 %v505, 17
        %v617 = vpop.permute.xlu0 %616
        %618 = vrot.lane.b32.xlu0 %v507, 17
        %v619 = vpop.permute.xlu0 %618
        %vm620 = vcmp.lt.s32.totalorder %v558, 17
        %v621 = vsel %vm620, %v617, %v619
        %v622 = vsel %vm620, %v619, %v617
        %vm623 = vmand %vm608, %vm612
        %vm624 = vmand %vm609, %vm613
        %v625 = vsel %vm623, 1, 0
        %v626 = vsel %vm624, 1, 0
        %vm627 = vcmp.eq.s32.totalorder %v625, 1
        %vm628 = vcmp.eq.s32.totalorder %v626, 1
        %v629 = vsel %vm627, %v622, 0.0
        %v630 = vsel %vm628, %v621, 0.0
        %631 = vrot.lane.b32.xlu0 %v511, 16
        %v632 = vpop.permute.xlu0 %631
        %633 = vrot.lane.b32.xlu0 %v513, 16
        %v634 = vpop.permute.xlu0 %633
        %vm635 = vcmp.lt.s32.totalorder %v558, 16
        %v636 = vsel %vm635, %v632, %v634
        %v637 = vsel %vm635, %v634, %v632
        %v638 = vsel %vm608, 1, 0
        %v639 = vsel %vm609, 1, 0
        %vm640 = vcmp.eq.s32.totalorder %v638, 1
        %vm641 = vcmp.eq.s32.totalorder %v639, 1
        %v642 = vsel %vm640, %v637, 0.0
        %v643 = vsel %vm641, %v636, 0.0
        %v644 = vadd.f32 %v629, %v642
        %v645 = vadd.f32 %v630, %v643
        %646 = vrot.lane.b32.xlu0 %v517, 15
        %v647 = vpop.permute.xlu0 %646
        %648 = vrot.lane.b32.xlu0 %v519, 15
        %v649 = vpop.permute.xlu0 %648
        %vm650 = vcmp.lt.s32.totalorder %v558, 15
        %v651 = vsel %vm650, %v647, %v649
        %v652 = vsel %vm650, %v649, %v647
        %vm653 = vmand %vm608, %vm614
        %vm654 = vmand %vm609, %vm615
        %v655 = vsel %vm653, 1, 0
        %v656 = vsel %vm654, 1, 0
        %vm657 = vcmp.eq.s32.totalorder %v655, 1
        %vm658 = vcmp.eq.s32.totalorder %v656, 1
        %v659 = vsel %vm657, %v652, 0.0
        %v660 = vsel %vm658, %v651, 0.0
        %v661 = vadd.f32 %v644, %v659
        %v662 = vadd.f32 %v645, %v660
        %663 = vrot.lane.b32.xlu0 %v523, 1
        %v664 = vpop.permute.xlu0 %663
        %665 = vrot.lane.b32.xlu0 %v525, 1
        %v666 = vpop.permute.xlu0 %665
        %vm667 = vcmp.lt.s32.totalorder %v558, 1
        %v668 = vsel %vm667, %v664, %v666
        %v669 = vsel %vm667, %v666, %v664
        %v670 = vsel %vm612, 1, 0
        %v671 = vsel %vm613, 1, 0
        %vm672 = vcmp.eq.s32.totalorder %v670, 1
        %vm673 = vcmp.eq.s32.totalorder %v671, 1
        %v674 = vsel %vm672, %v669, 0.0
        %v675 = vsel %vm673, %v668, 0.0
        %v676 = vadd.f32 %v661, %v674
        %v677 = vadd.f32 %v662, %v675
        %v678 = vadd.f32 %v676, %v529
        %v679 = vadd.f32 %v677, %v531
        %680 = vrot.lane.b32.xlu0 %v535, 127
        %v681 = vpop.permute.xlu0 %680
        %682 = vrot.lane.b32.xlu0 %v537, 127
        %v683 = vpop.permute.xlu0 %682
        %vm684 = vcmp.lt.s32.totalorder %v558, 127
        %v685 = vsel %vm684, %v681, %v683
        %v686 = vsel %vm684, %v683, %v681
        %v687 = vsel %vm614, 1, 0
        %v688 = vsel %vm615, 1, 0
        %vm689 = vcmp.eq.s32.totalorder %v687, 1
        %vm690 = vcmp.eq.s32.totalorder %v688, 1
        %v691 = vsel %vm689, %v685, 0.0
        %v692 = vsel %vm690, %v686, 0.0
        %v693 = vadd.f32 %v678, %v691
        %v694 = vadd.f32 %v679, %v692
        %695 = vrot.lane.b32.xlu0 %v541, 113
        %v696 = vpop.permute.xlu0 %695
        %697 = vrot.lane.b32.xlu0 %v543, 113
        %v698 = vpop.permute.xlu0 %697
        %vm699 = vcmp.lt.s32.totalorder %v558, 113
        %v700 = vsel %vm699, %v696, %v698
        %v701 = vsel %vm699, %v698, %v696
        %vm702 = vmand %vm610, %vm612
        %vm703 = vmand %vm611, %vm613
        %v704 = vsel %vm702, 1, 0
        %v705 = vsel %vm703, 1, 0
        %vm706 = vcmp.eq.s32.totalorder %v704, 1
        %vm707 = vcmp.eq.s32.totalorder %v705, 1
        %v708 = vsel %vm706, %v700, 0.0
        %v709 = vsel %vm707, %v701, 0.0
        %v710 = vadd.f32 %v693, %v708
        %v711 = vadd.f32 %v694, %v709
        %712 = vrot.lane.b32.xlu0 %v547, 112
        %v713 = vpop.permute.xlu0 %712
        %714 = vrot.lane.b32.xlu0 %v549, 112
        %v715 = vpop.permute.xlu0 %714
        %vm716 = vcmp.lt.s32.totalorder %v558, 112
        %v717 = vsel %vm716, %v713, %v715
        %v718 = vsel %vm716, %v715, %v713
        %v719 = vsel %vm610, 1, 0
        %v720 = vsel %vm611, 1, 0
        %vm721 = vcmp.eq.s32.totalorder %v719, 1
        %vm722 = vcmp.eq.s32.totalorder %v720, 1
        %v723 = vsel %vm721, %v717, 0.0
        %v724 = vsel %vm722, %v718, 0.0
        %v725 = vadd.f32 %v710, %v723
        %v726 = vadd.f32 %v711, %v724
        %727 = vrot.lane.b32.xlu0 %v553, 111
        %v728 = vpop.permute.xlu0 %727
        %729 = vrot.lane.b32.xlu0 %v555, 111
        %v730 = vpop.permute.xlu0 %729
        %vm731 = vcmp.lt.s32.totalorder %v558, 111
        %v732 = vsel %vm731, %v728, %v730
        %v733 = vsel %vm731, %v730, %v728
        %vm734 = vmand %vm610, %vm614
        %vm735 = vmand %vm611, %vm615
        %v736 = vsel %vm734, 1, 0
        %v737 = vsel %vm735, 1, 0
        %vm738 = vcmp.eq.s32.totalorder %v736, 1
        %vm739 = vcmp.eq.s32.totalorder %v737, 1
        %v740 = vsel %vm738, %v732, 0.0
        %v741 = vsel %vm739, %v733, 0.0
        %v742 = vadd.f32 %v725, %v740
        %v743 = vadd.f32 %v726, %v741
        %v744 = vld [vmem:[%s5] sm:$0xff]
        %746 = vset.pattern.permute.xlu0 0
        %747 = vperm.xlu0 %746, %v744
        %v748 = vpop.permute.xlu0 %747
        %v750 = vmul.f32 %v742, %v748
        %v751 = vmul.f32 %v743, %v748
        %v752 = vld [vmem:[%s6] sm:$0xff]
        %754 = vset.pattern.permute.xlu0 0
        %755 = vperm.xlu0 %754, %v752
        %v756 = vpop.permute.xlu0 %755
        %v758 = vadd.f32 %v750, %v756
        %v759 = vadd.f32 %v751, %v756
        %v760 = vadd.f32 %v758, %v370
        %v761 = vadd.f32 %v759, %v372
        %vm762 = vcmp.ge.f32.partialorder %v760, 0.0
        %vm763 = vcmp.ge.f32.partialorder %v761, 0.0
        %v764 = vmul.f32 %v760, 0.01
        %v765 = vmul.f32 %v761, 0.01
        %v766 = vsel %vm762, %v760, %v764
        %v767 = vsel %vm763, %v761, %v765
        %768 = vst [vmem:[%s272] sm:$0xff] %v766
        %769 = vst [vmem:[%s272 + $0x8] sm:$0xff] %v767
        %s770 = sand.u32 %s181, 1
        %s771 = scalar_lea.sflag [#allocation3], %s770
        %s772 = sand.u32 %s181, 1
        %s773 = smul.addr %s772, 16
        %s774 = scalar_lea.vmem [#allocation2], %s773
        // Predicated region
        $region49: #{tpu_custom_call.1} parent=47 // pred_check
          %p775 = pneg %p191
        $region50: #{tpu_custom_call.1} parent=47 // pred_check_branch
          %777 = sbr.rel (%p775) target = $region52
        $region51: #{tpu_custom_call.1} parent=47 // pred_region
          %s778 = smul.u32 2, %s21
          %s780 = ssub.s32 256, 256
          %781 = vsyncadd %s771, %s780
          %s782 = smul.addr %s778, 128
          %s783 = scalar_lea.hbm %s7, %s782
          %s785 = sshll.u32 %s774, 4
          %s786 = int_to_ptr.vmem [resolvable:$true] %s785
          %788 = dma.vmem_to_hbm [thread:$0]  %s786, 256, %s783, %s771
        $region52: #{tpu_custom_call.1} parent=47 // pred_fallthru
          _
      $region48: #{tpu_custom_call.1} parent=5 // pred_fallthru
        _
      %p789 = scmp.le.s32.totalorder 2, %s16
      // Predicated region
      $region53: #{tpu_custom_call.1} parent=5 // pred_check
        %p790 = pneg %p789
      $region54: #{tpu_custom_call.1} parent=5 // pred_check_branch
        %792 = sbr.rel (%p790) target = $region56
      $region55: #{tpu_custom_call.1} parent=5 // pred_region
        %s793 = ssub.s32 %s16, 2
        // Predicated region
        $region57: #{tpu_custom_call.1} parent=55 // pred_check
          %p794 = pneg %p197
        $region58: #{tpu_custom_call.1} parent=55 // pred_check_branch
          %796 = sbr.rel (%p794) target = $region60
        $region59: #{tpu_custom_call.1} parent=55 // pred_region
          %s797 = sand.u32 %s182, 1
          %s798 = scalar_lea.sflag [#allocation3], %s797
          %s799 = sand.u32 %s182, 1
          %s800 = smul.addr %s799, 16
          %s801 = scalar_lea.vmem [#allocation2], %s800
          %802 = dma.done %s798, 256
        $region60: #{tpu_custom_call.1} parent=55 // pred_fallthru
          _
      $region56: #{tpu_custom_call.1} parent=5 // pred_fallthru
        _
    $region6: #{tpu_custom_call.1} parent=1 // loop_footer
      %s20 = sadd.s32 1, %s16
    $region7: #{tpu_custom_call.1} parent=1 // loop_footer_branch
      %15 = sbr.rel target = $region3
    $region8: #{tpu_custom_call.1} parent=1 // loop_exit
      _
    %803 = vsyncpa [#allocation3], 1
    %s804 = scalar_lea.sflag [#allocation3], 1
    %805 = vsyncpa %s804, 1

</llo_original>
